<compile_context>
chip_gen: v6e
topology: v6e:2x2x1
jax: 0.10.0
libtpu: 0.0.40
codegen_flags: <defaults>
</compile_context>

<pallas_src>
import jax
import jax.numpy as jnp
from jax.experimental import pallas as pl
from jax.experimental.pallas import tpu as pltpu


def _choose_row_tile(h, max_rows=32):
    """Largest divisor of h <= max_rows giving >= 2 row tiles; else whole h."""
    for cand in range(min(h // 2, max_rows), 3, -1):
        if h % cand == 0:
            return cand
    return h


def _scale_pred_kernel(xk_ref, w1_ref, b1_ref, w2_ref, b2_ref, o_ref):
    """One (image, row-tile) per grid step.

    xk_ref : (1, H+2, W, 3*Cin)   kx-packed, H-padded image (resident across r)
    w1_ref : (3, 3*Cin, Cmid)     3x3 conv weights, BN scale folded, ky-major
    b1_ref : (1, Cmid)            folded BN bias (f32)
    w2_ref : (Cmid, Cout_pad)     1x1 conv weights (lane-padded)
    b2_ref : (1, Cout_pad)        1x1 conv bias (lane-padded, f32)
    o_ref  : (1, TH, W, Cout_pad) output row tile
    """
    th = o_ref.shape[1]
    r = pl.program_id(1)
    row0 = pl.multiple_of(r * th, th)

    # 3x3 conv as 3 MXU matmuls with K = 3*Cin (kx taps pre-packed on lanes).
    # Rows are read straight from the Ref: full-W, full-lane aligned loads.
    acc = None
    for ky in range(3):
        rows = xk_ref[0, pl.ds(row0 + ky, th), :, :]          # (TH, W, 3*Cin)
        part = jnp.einsum("hwk,ko->hwo", rows, w1_ref[ky],
                          preferred_element_type=jnp.float32)
        acc = part if acc is None else acc + part

    # Folded BatchNorm bias (scale already in w1) + LeakyReLU(0.1), in f32.
    y = acc + b1_ref[0]
    y = jnp.where(y > 0, y, 0.1 * y)

    # 1x1 conv with bias (no BN / activation), lane-dense padded output.
    z = jnp.einsum("hwc,co->hwo", y.astype(w2_ref.dtype), w2_ref[...],
                   preferred_element_type=jnp.float32) + b2_ref[0]
    o_ref[0] = z.astype(o_ref.dtype)


def scale_prediction_forward(x_nchw, params, num_classes,
                             compute_dtype=jnp.bfloat16):
    """Pallas implementation of ScalePrediction.forward.

    x_nchw: (N, Cin, H, W)  -> returns (N, 3, H, W, num_classes + 5)
    """
    w1 = params["w1"]            # (3, 3, Cin, Cmid)  HWIO
    gamma = params["bn_gamma"]   # (Cmid,)
    beta = params["bn_beta"]     # (Cmid,)
    rmean = params["bn_mean"]    # (Cmid,)
    rvar = params["bn_var"]      # (Cmid,)
    w2 = params["w2"]            # (Cmid, Cout)
    b2 = params["b2"]            # (Cout,)
    eps = 1e-5

    N, cin, H, W = x_nchw.shape
    cmid = w1.shape[3]
    cout = w2.shape[1]
    assert cout == 3 * (num_classes + 5)

    # ---- fold inference-BN scale into w1; keep only a per-channel bias ------
    scale = gamma * jax.lax.rsqrt(rvar + eps)                       # (Cmid,)
    w1f = (w1 * scale).astype(compute_dtype)                        # out-ch fold
    b1 = (beta - rmean * scale).reshape(1, cmid).astype(jnp.float32)
    # Pack kx onto the contraction axis: (ky, kx, cin, cmid) -> (ky, kx*cin, cmid)
    w1p = w1f.reshape(3, 3 * cin, cmid)

    # ---- lane-dense 1x1 conv: zero-pad Cout up to a multiple of 128 ---------
    cout_pad = ((cout + 127) // 128) * 128
    w2p = jnp.zeros((cmid, cout_pad), compute_dtype).at[:, :cout].set(
        w2.astype(compute_dtype))
    b2p = jnp.zeros((1, cout_pad), jnp.float32).at[0, :cout].set(
        b2.astype(jnp.float32))

    # ---- NCHW -> NHWC, pad H/W by 1, pack the 3 kx taps on channels ---------
    # (single XLA fusion producing the kernel's kx-packed input layout)
    x_nhwc = jnp.transpose(x_nchw, (0, 2, 3, 1)).astype(compute_dtype)
    xp = jnp.pad(x_nhwc, ((0, 0), (1, 1), (1, 1), (0, 0)))
    xk = jnp.concatenate([xp[:, :, kx:kx + W, :] for kx in range(3)], axis=-1)
    # xk: (N, H+2, W, 3*Cin), xk[n,h,w,kx*Cin+c] == xp[n,h,w+kx,c]

    th = _choose_row_tile(H)
    n_row_tiles = H // th
    out_dtype = x_nchw.dtype

    flops = 2 * N * H * W * (9 * cin * cmid + cmid * cout_pad)
    bytes_accessed = (
        xk.size * xk.dtype.itemsize + w1p.size * w1p.dtype.itemsize
        + w2p.size * w2p.dtype.itemsize + b1.size * 4 + b2p.size * 4
        + N * H * W * cout_pad * jnp.dtype(out_dtype).itemsize)

    out_nhwc_pad = pl.pallas_call(
        _scale_pred_kernel,
        out_shape=jax.ShapeDtypeStruct((N, H, W, cout_pad), out_dtype),
        grid_spec=pltpu.PrefetchScalarGridSpec(
            num_scalar_prefetch=0,
            grid=(N, n_row_tiles),
            in_specs=[
                # Whole kx-packed image; block index ignores r so it is
                # fetched once per image and stays VMEM-resident across r.
                pl.BlockSpec((1, H + 2, W, 3 * cin), lambda n, r: (n, 0, 0, 0)),
                pl.BlockSpec((3, 3 * cin, cmid), lambda n, r: (0, 0, 0)),
                pl.BlockSpec((1, cmid), lambda n, r: (0, 0)),
                pl.BlockSpec((cmid, cout_pad), lambda n, r: (0, 0)),
                pl.BlockSpec((1, cout_pad), lambda n, r: (0, 0)),
            ],
            out_specs=pl.BlockSpec((1, th, W, cout_pad),
                                   lambda n, r: (n, r, 0, 0)),
        ),
        compiler_params=pltpu.CompilerParams(
            dimension_semantics=("parallel", "parallel"),
            vmem_limit_bytes=64 * 1024 * 1024),
        cost_estimate=pl.CostEstimate(
            flops=int(flops), transcendentals=0,
            bytes_accessed=int(bytes_accessed)),
    )(xk, w1p, b1, w2p, b2p)

    # Slice away the lane padding, then channel c = a*(nc+5)+k  (PyTorch NCHW
    # reshape) followed by permute(0,1,3,4,2) => (N, 3, H, W, nc+5).
    out_nhwc = out_nhwc_pad[..., :cout]
    out5 = out_nhwc.reshape(N, H, W, 3, num_classes + 5)
    return jnp.transpose(out5, (0, 3, 1, 2, 4))


def _init_params(key, in_channels, num_classes):
    cmid = 2 * in_channels
    cout = 3 * (num_classes + 5)
    k1, k2, k3, k4, k5 = jax.random.split(key, 5)
    return {
        # conv1: 3x3, no bias (bn_act=True)
        "w1": jax.random.normal(k1, (3, 3, in_channels, cmid), jnp.float32) * 0.1,
        "bn_gamma": 1.0 + 0.1 * jax.random.normal(k2, (cmid,), jnp.float32),
        "bn_beta": 0.1 * jax.random.normal(k3, (cmid,), jnp.float32),
        "bn_mean": 0.05 * jax.random.normal(k4, (cmid,), jnp.float32),
        "bn_var": jnp.ones((cmid,), jnp.float32) * 1.2,
        # conv2: 1x1, with bias (bn_act=False)
        "w2": jax.random.normal(k5, (cmid, cout), jnp.float32) * 0.1,
        "b2": jnp.linspace(-0.1, 0.1, cout, dtype=jnp.float32),
    }


def _reference(x_nchw, params, num_classes):
    """Pure-JAX f32 reference (inference-BN semantics, matches PyTorch)."""
    eps = 1e-5
    x = jnp.transpose(x_nchw, (0, 2, 3, 1))
    y = jax.lax.conv_general_dilated(
        x, params["w1"], window_strides=(1, 1), padding="SAME",
        dimension_numbers=("NHWC", "HWIO", "NHWC"))
    scale = params["bn_gamma"] / jnp.sqrt(params["bn_var"] + eps)
    y = (y - params["bn_mean"]) * scale + params["bn_beta"]
    y = jnp.where(y > 0, y, 0.1 * y)
    z = jnp.einsum("nhwc,co->nhwo", y, params["w2"]) + params["b2"]
    n, h, w, _ = z.shape
    z = z.reshape(n, h, w, 3, num_classes + 5)
    return jnp.transpose(z, (0, 3, 1, 2, 4))


if __name__ == "__main__":
    in_channels = 4
    num_classes = 3
    N, H, W = 2, 16, 16

    key = jax.random.PRNGKey(0)
    kx, kp = jax.random.split(key)
    x = jax.random.normal(kx, (N, in_channels, H, W), jnp.float32)
    params = _init_params(kp, in_channels, num_classes)

    ref = _reference(x, params, num_classes)

    # 1) Exact-semantics check with f32 compute (tight tolerance).
    out_f32 = jax.block_until_ready(
        scale_prediction_forward(x, params, num_classes,
                                 compute_dtype=jnp.float32))
    assert out_f32.shape == (N, 3, H, W, num_classes + 5), out_f32.shape
    assert jnp.allclose(out_f32, ref, atol=1e-4, rtol=1e-4), (
        float(jnp.max(jnp.abs(out_f32 - ref))))

    # 2) Optimized path: bf16 MXU operands, f32 accumulation (looser tol).
    out = jax.block_until_ready(
        scale_prediction_forward(x, params, num_classes))
    assert out.shape == (N, 3, H, W, num_classes + 5), out.shape
    assert jnp.allclose(out, ref, atol=5e-2, rtol=5e-2), (
        float(jnp.max(jnp.abs(out - ref))))

    print("KERNEL_OK")
</pallas_src>

<mosaic_0001>
module attributes {stable_mosaic.version = 11 : i64} {
  func.func @_scale_pred_kernel(%arg0: i32, %arg1: i32, %arg2: memref<1x18x16x12xf32, #tpu.memory_space<vmem>>, %arg3: memref<3x12x8xf32, #tpu.memory_space<vmem>>, %arg4: memref<1x8xf32, #tpu.memory_space<vmem>>, %arg5: memref<8x128xf32, #tpu.memory_space<vmem>>, %arg6: memref<1x128xf32, #tpu.memory_space<vmem>>, %arg7: memref<1x8x16x128xf32, #tpu.memory_space<vmem>>) attributes {dimension_semantics = [#tpu.dimension_semantics<parallel>, #tpu.dimension_semantics<parallel>], iteration_bounds = array<i64: 2, 2>, scalar_prefetch = 0 : i64, scratch_operands = 0 : i64, tpu.core_type = #tpu.core_type<tc>, window_params = [{transform_indices = @transform_0, window_bounds = array<i64: 1, 18, 16, 12>}, {pipeline_mode = #tpu.pipeline_mode<synchronous>, transform_indices = @transform_1, window_bounds = array<i64: 3, 12, 8>}, {pipeline_mode = #tpu.pipeline_mode<synchronous>, transform_indices = @transform_2, window_bounds = array<i64: 1, 8>}, {pipeline_mode = #tpu.pipeline_mode<synchronous>, transform_indices = @transform_3, window_bounds = array<i64: 8, 128>}, {pipeline_mode = #tpu.pipeline_mode<synchronous>, transform_indices = @transform_4, window_bounds = array<i64: 1, 128>}, {transform_indices = @transform_5, window_bounds = array<i64: 1, 8, 16, 128>}]} {
    %c8_i32 = arith.constant 8 : i32
    %0 = arith.muli %arg1, %c8_i32 : i32
    %1 = tpu.assume_multiple %0, 8 : i32
    %c0_i32 = arith.constant 0 : i32
    %2 = arith.addi %1, %c0_i32 : i32
    %c0 = arith.constant 0 : index
    %3 = arith.index_cast %2 : i32 to index
    %c0_0 = arith.constant 0 : index
    %c0_1 = arith.constant 0 : index
    %4 = vector.load %arg2[%c0, %3, %c0_0, %c0_1] : memref<1x18x16x12xf32, #tpu.memory_space<vmem>>, vector<1x8x16x12xf32>
    %5 = vector.shape_cast %4 : vector<1x8x16x12xf32> to vector<8x16x12xf32>
    %c0_2 = arith.constant 0 : index
    %c0_3 = arith.constant 0 : index
    %c0_4 = arith.constant 0 : index
    %6 = vector.load %arg3[%c0_2, %c0_3, %c0_4] : memref<3x12x8xf32, #tpu.memory_space<vmem>>, vector<1x12x8xf32>
    %7 = vector.shape_cast %6 : vector<1x12x8xf32> to vector<12x8xf32>
    "tpu.trace_start"() <{level = 10 : i32, message = "hwk,ko->hwo"}> : () -> ()
    %cst = arith.constant dense<0.000000e+00> : vector<8x16x8xf32>
    %8 = tpu.matmul %5, %7, %cst {dimension_numbers = #tpu.dot_dimension_numbers<[2], [0], [0, 1], [1], [0, 0, 0, 1, 1, 1], [], []>} : vector<8x16x12xf32>, vector<12x8xf32>, vector<8x16x8xf32> -> vector<8x16x8xf32>
    "tpu.trace_stop"() : () -> ()
    %c1_i32 = arith.constant 1 : i32
    %9 = arith.addi %1, %c1_i32 : i32
    %c0_5 = arith.constant 0 : index
    %10 = arith.index_cast %9 : i32 to index
    %c0_6 = arith.constant 0 : index
    %c0_7 = arith.constant 0 : index
    %11 = vector.load %arg2[%c0_5, %10, %c0_6, %c0_7] : memref<1x18x16x12xf32, #tpu.memory_space<vmem>>, vector<1x8x16x12xf32>
    %12 = vector.shape_cast %11 : vector<1x8x16x12xf32> to vector<8x16x12xf32>
    %c1 = arith.constant 1 : index
    %c0_8 = arith.constant 0 : index
    %c0_9 = arith.constant 0 : index
    %13 = vector.load %arg3[%c1, %c0_8, %c0_9] : memref<3x12x8xf32, #tpu.memory_space<vmem>>, vector<1x12x8xf32>
    %14 = vector.shape_cast %13 : vector<1x12x8xf32> to vector<12x8xf32>
    "tpu.trace_start"() <{level = 10 : i32, message = "hwk,ko->hwo"}> : () -> ()
    %cst_10 = arith.constant dense<0.000000e+00> : vector<8x16x8xf32>
    %15 = tpu.matmul %12, %14, %cst_10 {dimension_numbers = #tpu.dot_dimension_numbers<[2], [0], [0, 1], [1], [0, 0, 0, 1, 1, 1], [], []>} : vector<8x16x12xf32>, vector<12x8xf32>, vector<8x16x8xf32> -> vector<8x16x8xf32>
    "tpu.trace_stop"() : () -> ()
    %16 = arith.addf %8, %15 : vector<8x16x8xf32>
    %c2_i32 = arith.constant 2 : i32
    %17 = arith.addi %1, %c2_i32 : i32
    %c0_11 = arith.constant 0 : index
    %18 = arith.index_cast %17 : i32 to index
    %c0_12 = arith.constant 0 : index
    %c0_13 = arith.constant 0 : index
    %19 = vector.load %arg2[%c0_11, %18, %c0_12, %c0_13] : memref<1x18x16x12xf32, #tpu.memory_space<vmem>>, vector<1x8x16x12xf32>
    %20 = vector.shape_cast %19 : vector<1x8x16x12xf32> to vector<8x16x12xf32>
    %c2 = arith.constant 2 : index
    %c0_14 = arith.constant 0 : index
    %c0_15 = arith.constant 0 : index
    %21 = vector.load %arg3[%c2, %c0_14, %c0_15] : memref<3x12x8xf32, #tpu.memory_space<vmem>>, vector<1x12x8xf32>
    %22 = vector.shape_cast %21 : vector<1x12x8xf32> to vector<12x8xf32>
    "tpu.trace_start"() <{level = 10 : i32, message = "hwk,ko->hwo"}> : () -> ()
    %cst_16 = arith.constant dense<0.000000e+00> : vector<8x16x8xf32>
    %23 = tpu.matmul %20, %22, %cst_16 {dimension_numbers = #tpu.dot_dimension_numbers<[2], [0], [0, 1], [1], [0, 0, 0, 1, 1, 1], [], []>} : vector<8x16x12xf32>, vector<12x8xf32>, vector<8x16x8xf32> -> vector<8x16x8xf32>
    "tpu.trace_stop"() : () -> ()
    %24 = arith.addf %16, %23 : vector<8x16x8xf32>
    %c0_17 = arith.constant 0 : index
    %c0_18 = arith.constant 0 : index
    %25 = vector.load %arg4[%c0_17, %c0_18] : memref<1x8xf32, #tpu.memory_space<vmem>>, vector<1x8xf32>
    %26 = vector.shape_cast %25 : vector<1x8xf32> to vector<8xf32>
    %27 = vector.shape_cast %26 : vector<8xf32> to vector<1x1x8xf32>
    %28 = vector.broadcast %27 : vector<1x1x8xf32> to vector<8x16x8xf32>
    %29 = arith.addf %24, %28 : vector<8x16x8xf32>
    %cst_19 = arith.constant 0.000000e+00 : f32
    %30 = vector.broadcast %cst_19 : f32 to vector<8x16x8xf32>
    %31 = arith.cmpf ogt, %29, %30 : vector<8x16x8xf32>
    %cst_20 = arith.constant 1.000000e-01 : f32
    %32 = vector.broadcast %cst_20 : f32 to vector<8x16x8xf32>
    %33 = arith.mulf %32, %29 : vector<8x16x8xf32>
    %34 = arith.select %31, %29, %33 : vector<8x16x8xi1>, vector<8x16x8xf32>
    %c0_21 = arith.constant 0 : index
    %c0_22 = arith.constant 0 : index
    %35 = vector.load %arg5[%c0_21, %c0_22] : memref<8x128xf32, #tpu.memory_space<vmem>>, vector<8x128xf32>
    "tpu.trace_start"() <{level = 10 : i32, message = "hwc,co->hwo"}> : () -> ()
    %cst_23 = arith.constant dense<0.000000e+00> : vector<8x16x128xf32>
    %36 = tpu.matmul %34, %35, %cst_23 {dimension_numbers = #tpu.dot_dimension_numbers<[2], [0], [0, 1], [1], [0, 0, 0, 1, 1, 1], [], []>} : vector<8x16x8xf32>, vector<8x128xf32>, vector<8x16x128xf32> -> vector<8x16x128xf32>
    "tpu.trace_stop"() : () -> ()
    %c0_24 = arith.constant 0 : index
    %c0_25 = arith.constant 0 : index
    %37 = vector.load %arg6[%c0_24, %c0_25] : memref<1x128xf32, #tpu.memory_space<vmem>>, vector<1x128xf32>
    %38 = vector.shape_cast %37 : vector<1x128xf32> to vector<128xf32>
    %39 = vector.shape_cast %38 : vector<128xf32> to vector<1x1x128xf32>
    %40 = vector.broadcast %39 : vector<1x1x128xf32> to vector<8x16x128xf32>
    %41 = arith.addf %36, %40 : vector<8x16x128xf32>
    %c0_26 = arith.constant 0 : index
    %c0_27 = arith.constant 0 : index
    %c0_28 = arith.constant 0 : index
    %c0_29 = arith.constant 0 : index
    %42 = vector.load %arg7[%c0_26, %c0_27, %c0_28, %c0_29] : memref<1x8x16x128xf32, #tpu.memory_space<vmem>>, vector<1x8x16x128xf32>
    %43 = vector.shape_cast %42 : vector<1x8x16x128xf32> to vector<8x16x128xf32>
    %44 = vector.shape_cast %41 : vector<8x16x128xf32> to vector<1x8x16x128xf32>
    tpu.vector_store %arg7[%c0_26, %c0_27, %c0_28, %c0_29], %44 {strides = array<i32>} : memref<1x8x16x128xf32, #tpu.memory_space<vmem>>, vector<1x8x16x128xf32>,
    return
  }
  func.func @transform_0(%arg0: i32, %arg1: i32) -> (i32, i32, i32, i32) {
    %c0_i32 = arith.constant 0 : i32
    %c0_i32_0 = arith.constant 0 : i32
    %c0_i32_1 = arith.constant 0 : i32
    %c0_i32_2 = arith.constant 0 : i32
    return %arg0, %c0_i32, %c0_i32_0, %c0_i32_1 : i32, i32, i32, i32
  }
  func.func @transform_1(%arg0: i32, %arg1: i32) -> (i32, i32, i32) {
    %c0_i32 = arith.constant 0 : i32
    %c0_i32_0 = arith.constant 0 : i32
    %c0_i32_1 = arith.constant 0 : i32
    %c0_i32_2 = arith.constant 0 : i32
    return %c0_i32, %c0_i32_0, %c0_i32_1 : i32, i32, i32
  }
  func.func @transform_2(%arg0: i32, %arg1: i32) -> (i32, i32) {
    %c0_i32 = arith.constant 0 : i32
    %c0_i32_0 = arith.constant 0 : i32
    %c0_i32_1 = arith.constant 0 : i32
    return %c0_i32, %c0_i32_0 : i32, i32
  }
  func.func @transform_3(%arg0: i32, %arg1: i32) -> (i32, i32) {
    %c0_i32 = arith.constant 0 : i32
    %c0_i32_0 = arith.constant 0 : i32
    %c0_i32_1 = arith.constant 0 : i32
    return %c0_i32, %c0_i32_0 : i32, i32
  }
  func.func @transform_4(%arg0: i32, %arg1: i32) -> (i32, i32) {
    %c0_i32 = arith.constant 0 : i32
    %c0_i32_0 = arith.constant 0 : i32
    %c0_i32_1 = arith.constant 0 : i32
    return %c0_i32, %c0_i32_0 : i32, i32
  }
  func.func @transform_5(%arg0: i32, %arg1: i32) -> (i32, i32, i32, i32) {
    %c0_i32 = arith.constant 0 : i32
    %c0_i32_0 = arith.constant 0 : i32
    %c0_i32_1 = arith.constant 0 : i32
    return %arg0, %arg1, %c0_i32, %c0_i32_0 : i32, i32, i32, i32
  }
}

</mosaic_0001>

<llo_original>
// kernel: tpu_custom_call.1
$region0: #{tpu_custom_call.1}
  #allocation0 [shape = 'u32[]', space=smem, size = 0x4, offset = 0x4, fixed_abs, tag = 'smem constant byte address 0x4 - core index']
  #allocation1 [shape = 'u32[144,128]{1,0:T(1,128)}', space=vmem, size = 0x12000, scoped, tag = 'internal scratch']
  %s0 = inlined_call_operand.vmem [shape: f32[2,18,16,12], index: 0, kind: input, shape index: {}]
  %s1 = inlined_call_operand.vmem [shape: f32[3,12,8], index: 1, kind: input, shape index: {}]
  %s2 = inlined_call_operand.vmem [shape: f32[1,8], index: 2, kind: input, shape index: {}]
  %s3 = inlined_call_operand.vmem [shape: f32[8,128], index: 3, kind: input, shape index: {}]
  %s4 = inlined_call_operand.vmem [shape: f32[1,128], index: 4, kind: input, shape index: {}]
  %s5 = inlined_call_operand.hbm [shape: f32[2,16,16,128], index: 5, kind: output, shape index: {}]
  %s6 = sld [smem:[#allocation0]]
  $region53: #{tpu_custom_call.1} parent=0
    _
  %s8 = ssub.s32 1, %s6
  %s9 = scalar_select 0, %s8, %s6
  $region1: #{tpu_custom_call.1} parent=0
    #allocation2 [shape = 'u8[131072]{0}', space=vmem, size = 0x20000, scoped, tag = 'output window, operand 0']
    #allocation3 [shape = 's32[2]{0}', space=sflag, size = 0x8, scoped, tag = 'scoped memory for tpu_custom_call.1']
    %10 = vsyncpa [#allocation3], 0
    %s11 = scalar_lea.sflag [#allocation3], 1
    %12 = vsyncpa %s11, 0
    loop: start=0, step=1, limit=6
    $region2: #{tpu_custom_call.1} parent=1 // loop_pre_header
      _
    $region3: #{tpu_custom_call.1} parent=1 // loop_header
      %s14 = sphi 0, %s18
      %p15 = scmp.ge.s32.totalorder %s14, 6
      %s21 = sphi 0, %s33
      %s22 = sphi 0, %s29
      %s23 = sphi 0, %s21
      %s24 = sphi 0, %s22
      %s25 = sphi 0, %s23
      %s26 = sphi 0, %s24
      %s36 = sphi 0, %s38
      %s39 = sphi 0, %s36
      %s40 = sphi 0, %s39
      %s56 = sphi 0, %s40
      %s60 = sphi 0, %s60
      %s62 = sphi 0, %s60
      %s63 = sphi 0, %s62
      %s77 = sphi 0, %s63
      %s81 = sphi 0, %s81
      %s83 = sphi 0, %s81
      %s84 = sphi 0, %s83
      %s98 = sphi 0, %s84
      %s102 = sphi 0, %s102
      %s104 = sphi 0, %s102
      %s105 = sphi 0, %s104
      %s119 = sphi 0, %s105
      %s123 = sphi 0, %s123
      %s125 = sphi 0, %s123
      %s126 = sphi 0, %s125
      %s140 = sphi 0, %s126
      %s148 = sphi 0, %s150
      %s151 = sphi 0, %s148
      %s152 = sphi 0, %s151
      %s168 = sphi 0, %s152
    $region4: #{tpu_custom_call.1} parent=1 // loop_header_branch
      %17 = sbr.rel (%p15) target = $region8
    $region5: #{tpu_custom_call.1} parent=1 // loop_body
      %s19 = ssub.s32 %s14, 1
      %s20 = ssub.s32 %s14, 2
      %s27 = sadd.s32 1, %s22
      %p28 = scmp.ge.s32.totalorder %s27, 2
      %s29 = scalar_select %p28, 0, %s27
      %s30 = sadd.s32 1, %s21
      %s31 = scalar_select %p28, %s30, %s21
      %p32 = scmp.ge.s32.totalorder %s31, 2
      %s33 = scalar_select %p32, 0, %s31
      %s34 = ssub.s32 %s21, %s33
      %p35 = scmp.eq.s32.totalorder %s34, 0
      %s37 = sadd.s32 %s36, 1
      %s38 = scalar_select %p35, %s36, %s37
      %p41 = pneg %p35
      %p42 = scmp.eq.s32.totalorder %s14, 3
      %p43 = por %p41, %p42
      %p44 = scmp.ne.s32.totalorder %s36, %s39
      %p45 = scmp.eq.s32.totalorder %s14, 0
      %p46 = por %p44, %p45
      %p47 = scmp.ne.s32.totalorder %s36, %s39
      %p48 = scmp.eq.s32.totalorder %s19, 3
      %p49 = por %p47, %p48
      %p50 = scmp.ne.s32.totalorder %s39, %s40
      %p51 = scmp.eq.s32.totalorder %s19, 0
      %p52 = por %p50, %p51
      %p53 = scmp.ne.s32.totalorder %s39, %s40
      %p54 = scmp.eq.s32.totalorder %s20, 3
      %p55 = por %p53, %p54
      %p57 = scmp.ne.s32.totalorder %s40, %s56
      %p58 = scmp.eq.s32.totalorder %s20, 0
      %p59 = por %p57, %p58
      %s61 = sadd.s32 %s60, 1
      %p64 = scmp.eq.s32.totalorder %s14, 3
      %p65 = scmp.ne.s32.totalorder %s60, %s62
      %p66 = scmp.eq.s32.totalorder %s14, 0
      %p67 = por %p65, %p66
      %p68 = scmp.ne.s32.totalorder %s60, %s62
      %p69 = scmp.eq.s32.totalorder %s19, 3
      %p70 = por %p68, %p69
      %p71 = scmp.ne.s32.totalorder %s62, %s63
      %p72 = scmp.eq.s32.totalorder %s19, 0
      %p73 = por %p71, %p72
      %p74 = scmp.ne.s32.totalorder %s62, %s63
      %p75 = scmp.eq.s32.totalorder %s20, 3
      %p76 = por %p74, %p75
      %p78 = scmp.ne.s32.totalorder %s63, %s77
      %p79 = scmp.eq.s32.totalorder %s20, 0
      %p80 = por %p78, %p79
      %s82 = sadd.s32 %s81, 1
      %p85 = scmp.eq.s32.totalorder %s14, 3
      %p86 = scmp.ne.s32.totalorder %s81, %s83
      %p87 = scmp.eq.s32.totalorder %s14, 0
      %p88 = por %p86, %p87
      %p89 = scmp.ne.s32.totalorder %s81, %s83
      %p90 = scmp.eq.s32.totalorder %s19, 3
      %p91 = por %p89, %p90
      %p92 = scmp.ne.s32.totalorder %s83, %s84
      %p93 = scmp.eq.s32.totalorder %s19, 0
      %p94 = por %p92, %p93
      %p95 = scmp.ne.s32.totalorder %s83, %s84
      %p96 = scmp.eq.s32.totalorder %s20, 3
      %p97 = por %p95, %p96
      %p99 = scmp.ne.s32.totalorder %s84, %s98
      %p100 = scmp.eq.s32.totalorder %s20, 0
      %p101 = por %p99, %p100
      %s103 = sadd.s32 %s102, 1
      %p106 = scmp.eq.s32.totalorder %s14, 3
      %p107 = scmp.ne.s32.totalorder %s102, %s104
      %p108 = scmp.eq.s32.totalorder %s14, 0
      %p109 = por %p107, %p108
      %p110 = scmp.ne.s32.totalorder %s102, %s104
      %p111 = scmp.eq.s32.totalorder %s19, 3
      %p112 = por %p110, %p111
      %p113 = scmp.ne.s32.totalorder %s104, %s105
      %p114 = scmp.eq.s32.totalorder %s19, 0
      %p115 = por %p113, %p114
      %p116 = scmp.ne.s32.totalorder %s104, %s105
      %p117 = scmp.eq.s32.totalorder %s20, 3
      %p118 = por %p116, %p117
      %p120 = scmp.ne.s32.totalorder %s105, %s119
      %p121 = scmp.eq.s32.totalorder %s20, 0
      %p122 = por %p120, %p121
      %s124 = sadd.s32 %s123, 1
      %p127 = scmp.eq.s32.totalorder %s14, 3
      %p128 = scmp.ne.s32.totalorder %s123, %s125
      %p129 = scmp.eq.s32.totalorder %s14, 0
      %p130 = por %p128, %p129
      %p131 = scmp.ne.s32.totalorder %s123, %s125
      %p132 = scmp.eq.s32.totalorder %s19, 3
      %p133 = por %p131, %p132
      %p134 = scmp.ne.s32.totalorder %s125, %s126
      %p135 = scmp.eq.s32.totalorder %s19, 0
      %p136 = por %p134, %p135
      %p137 = scmp.ne.s32.totalorder %s125, %s126
      %p138 = scmp.eq.s32.totalorder %s20, 3
      %p139 = por %p137, %p138
      %p141 = scmp.ne.s32.totalorder %s126, %s140
      %p142 = scmp.eq.s32.totalorder %s20, 0
      %p143 = por %p141, %p142
      %s144 = ssub.s32 %s21, %s33
      %s145 = ssub.s32 %s22, %s29
      %s146 = sor.u32 %s144, %s145
      %p147 = scmp.eq.s32.totalorder %s146, 0
      %s149 = sadd.s32 %s148, 1
      %s150 = scalar_select %p147, %s148, %s149
      %p153 = pneg %p147
      %p154 = scmp.eq.s32.totalorder %s14, 3
      %p155 = por %p153, %p154
      %p156 = scmp.ne.s32.totalorder %s148, %s151
      %p157 = scmp.eq.s32.totalorder %s14, 0
      %p158 = por %p156, %p157
      %p159 = scmp.ne.s32.totalorder %s148, %s151
      %p160 = scmp.eq.s32.totalorder %s19, 3
      %p161 = por %p159, %p160
      %p162 = scmp.ne.s32.totalorder %s151, %s152
      %p163 = scmp.eq.s32.totalorder %s19, 0
      %p164 = por %p162, %p163
      %p165 = scmp.ne.s32.totalorder %s151, %s152
      %p166 = scmp.eq.s32.totalorder %s20, 3
      %p167 = por %p165, %p166
      %p169 = scmp.ne.s32.totalorder %s152, %s168
      %p170 = scmp.eq.s32.totalorder %s20, 0
      %p171 = por %p169, %p170
      %p172 = scmp.le.s32.totalorder 1, %s14
      %p173 = scmp.lt.s32.totalorder %s14, 5
      %p174 = pnand %p172, %p173
      %p175 = pneg %p174
      // Predicated region
      $region9: #{tpu_custom_call.1} parent=5 // pred_check
        _
      $region10: #{tpu_custom_call.1} parent=5 // pred_check_branch
        %177 = sbr.rel (%p174) target = $region12
      $region11: #{tpu_custom_call.1} parent=5 // pred_region
        %s178 = ssub.s32 %s14, 1
        // Predicated region
        $region13: #{tpu_custom_call.1} parent=11 // pred_check
          %p179 = pneg %p73
        $region14: #{tpu_custom_call.1} parent=11 // pred_check_branch
          %181 = sbr.rel (%p179) target = $region16
        $region15: #{tpu_custom_call.1} parent=11 // pred_region
          _
        $region16: #{tpu_custom_call.1} parent=11 // pred_fallthru
          _
        // Predicated region
        $region17: #{tpu_custom_call.1} parent=11 // pred_check
          %p182 = pneg %p94
        $region18: #{tpu_custom_call.1} parent=11 // pred_check_branch
          %184 = sbr.rel (%p182) target = $region20
        $region19: #{tpu_custom_call.1} parent=11 // pred_region
          _
        $region20: #{tpu_custom_call.1} parent=11 // pred_fallthru
          _
        // Predicated region
        $region21: #{tpu_custom_call.1} parent=11 // pred_check
          %p185 = pneg %p115
        $region22: #{tpu_custom_call.1} parent=11 // pred_check_branch
          %187 = sbr.rel (%p185) target = $region24
        $region23: #{tpu_custom_call.1} parent=11 // pred_region
          _
        $region24: #{tpu_custom_call.1} parent=11 // pred_fallthru
          _
        // Predicated region
        $region25: #{tpu_custom_call.1} parent=11 // pred_check
          %p188 = pneg %p136
        $region26: #{tpu_custom_call.1} parent=11 // pred_check_branch
          %190 = sbr.rel (%p188) target = $region28
        $region27: #{tpu_custom_call.1} parent=11 // pred_region
          _
        $region28: #{tpu_custom_call.1} parent=11 // pred_fallthru
          _
      $region12: #{tpu_custom_call.1} parent=5 // pred_fallthru
        _
      %p191 = scmp.lt.s32.totalorder %s14, 4
      // Predicated region
      $region29: #{tpu_custom_call.1} parent=5 // pred_check
        %p192 = pneg %p191
      $region30: #{tpu_custom_call.1} parent=5 // pred_check_branch
        %194 = sbr.rel (%p192) target = $region32
      $region31: #{tpu_custom_call.1} parent=5 // pred_region
        // Predicated region
        $region33: #{tpu_custom_call.1} parent=31 // pred_check
          %p195 = pneg %p46
        $region34: #{tpu_custom_call.1} parent=31 // pred_check_branch
          %197 = sbr.rel (%p195) target = $region36
        $region35: #{tpu_custom_call.1} parent=31 // pred_region
          %p198 = scmp.lt.s32.totalorder %s21, 1
          %s199 = scalar_select %p198, %s21, 1
          %s200 = smul.addr %s199, 36
          %s201 = smul.addr %s200, 8
          %s202 = scalar_lea.vmem %s0, %s201
        $region36: #{tpu_custom_call.1} parent=31 // pred_fallthru
          _
      $region32: #{tpu_custom_call.1} parent=5 // pred_fallthru
        _
      %p203 = scmp.le.s32.totalorder 1, %s14
      %p204 = scmp.lt.s32.totalorder %s14, 5
      %p205 = pnand %p203, %p204
      %p206 = pneg %p205
      // Predicated region
      $region37: #{tpu_custom_call.1} parent=5 // pred_check
        _
      $region38: #{tpu_custom_call.1} parent=5 // pred_check_branch
        %208 = sbr.rel (%p205) target = $region40
      $region39: #{tpu_custom_call.1} parent=5 // pred_region
        %s209 = ssub.s32 %s14, 1
        %p210 = scmp.lt.s32.totalorder %s23, 1
        %s211 = scalar_select %p210, %s23, 1
        %s212 = smul.addr %s211, 36
        %s213 = smul.addr %s212, 8
        %s214 = scalar_lea.vmem %s0, %s213
        %p215 = pneg %p52
        %p216 = pneg %p49
        %p217 = pneg %p73
        %p218 = pneg %p70
        %p219 = pneg %p94
        %p220 = pneg %p91
        %p221 = pneg %p115
        %p222 = pneg %p112
        %p223 = pneg %p136
        %p224 = pneg %p133
        %p225 = pneg %p164
        %p226 = pneg %p161
        %s227 = sand.u32 %s151, 1
        %s228 = scalar_lea.sflag [#allocation3], %s227
        %s229 = sand.u32 %s151, 1
        %s230 = smul.addr %s229, 128
        %s231 = scalar_lea.vmem [#allocation2], %s230
        %p232 = scmp.lt.s32.totalorder %s23, 1
        %s233 = scalar_select %p232, %s23, 1
        %s234 = smul.addr %s233, 36
        %s235 = smul.addr %s234, 8
        %s236 = scalar_lea.vmem %s0, %s235
        %s237 = smul.u32 8, %s24
        %s238 = smul.u32 %s24, 8
        %s239 = smul.u32 %s238, 16
        %s240 = scalar_lea.vmem %s236, %s239
        %v241 = vld [vmem:[%s240] sm:$0xff]
        %v242 = vld [vmem:[%s240 + $0x8] sm:$0xff]
        %v243 = vld [vmem:[%s240 + $0x10] sm:$0xff]
        %v244 = vld [vmem:[%s240 + $0x18] sm:$0xff]
        %v245 = vld [vmem:[%s240 + $0x20] sm:$0xff]
        %v246 = vld [vmem:[%s240 + $0x28] sm:$0xff]
        %v247 = vld [vmem:[%s240 + $0x30] sm:$0xff]
        %v248 = vld [vmem:[%s240 + $0x38] sm:$0xff]
        %v249 = vld [vmem:[%s240 + $0x40] sm:$0xff]
        %v250 = vld [vmem:[%s240 + $0x48] sm:$0xff]
        %v251 = vld [vmem:[%s240 + $0x50] sm:$0xff]
        %v252 = vld [vmem:[%s240 + $0x58] sm:$0xff]
        %v253 = vld [vmem:[%s240 + $0x60] sm:$0xff]
        %v254 = vld [vmem:[%s240 + $0x68] sm:$0xff]
        %v255 = vld [vmem:[%s240 + $0x70] sm:$0xff]
        %v256 = vld [vmem:[%s240 + $0x78] sm:$0xff]
        %v257 = vld [vmem:[%s1] sm:$0xff]
        %v258 = vld [vmem:[%s1 + $0x8] sm:$0xf]
        %s259 = sadd.s32 %s238, 1
        %s260 = smul.u32 %s259, 16
        %s261 = scalar_lea.vmem %s236, %s260
        %v262 = vld [vmem:[%s261] sm:$0xff]
        %v263 = vld [vmem:[%s261 + $0x8] sm:$0xff]
        %v264 = vld [vmem:[%s261 + $0x10] sm:$0xff]
        %v265 = vld [vmem:[%s261 + $0x18] sm:$0xff]
        %v266 = vld [vmem:[%s261 + $0x20] sm:$0xff]
        %v267 = vld [vmem:[%s261 + $0x28] sm:$0xff]
        %v268 = vld [vmem:[%s261 + $0x30] sm:$0xff]
        %v269 = vld [vmem:[%s261 + $0x38] sm:$0xff]
        %v270 = vld [vmem:[%s261 + $0x40] sm:$0xff]
        %v271 = vld [vmem:[%s261 + $0x48] sm:$0xff]
        %v272 = vld [vmem:[%s261 + $0x50] sm:$0xff]
        %v273 = vld [vmem:[%s261 + $0x58] sm:$0xff]
        %v274 = vld [vmem:[%s261 + $0x60] sm:$0xff]
        %v275 = vld [vmem:[%s261 + $0x68] sm:$0xff]
        %v276 = vld [vmem:[%s261 + $0x70] sm:$0xff]
        %v277 = vld [vmem:[%s261 + $0x78] sm:$0xff]
        %s278 = scalar_lea.vmem %s1, 16
        %v279 = vld [vmem:[%s278] sm:$0xff]
        %v280 = vld [vmem:[%s278 + $0x8] sm:$0xf]
        %vm281 = vcmask 97280
        %v283 = vsel %vm281, %v262, 0
        %v286 = vsel %vm281, %v263, 0
        %v289 = vsel %vm281, %v264, 0
        %v292 = vsel %vm281, %v265, 0
        %v295 = vsel %vm281, %v266, 0
        %v298 = vsel %vm281, %v267, 0
        %v301 = vsel %vm281, %v268, 0
        %v304 = vsel %vm281, %v269, 0
        %v307 = vsel %vm281, %v270, 0
        %v310 = vsel %vm281, %v271, 0
        %v313 = vsel %vm281, %v272, 0
        %v316 = vsel %vm281, %v273, 0
        %v319 = vsel %vm281, %v274, 0
        %v322 = vsel %vm281, %v275, 0
        %v325 = vsel %vm281, %v276, 0
        %v328 = vsel %vm281, %v277, 0
        %vm330 = vcmask 1043456
        %v332 = vsel %vm330, %v280, 0
        %334 = vmatprep.subr.mxu0 0.0
        %335 = vmatpush1.msra.mxu0 0.0
        %336 = vmatprep.subr.mxu0 0.0
        %337 = vmatpush1.msra.mxu0 0.0
        %338 = vmatprep.subr.mxu0 0.0
        %339 = vmatpush1.msra.mxu0 0.0
        %340 = vmatprep.subr.mxu0 0.0
        %341 = vmatpush1.msra.mxu0 0.0
        %342 = vmatprep.subr.mxu0 0.0
        %343 = vmatpush1.msra.mxu0 0.0
        %344 = vmatprep.subr.mxu0 0.0
        %345 = vmatpush1.msra.mxu0 0.0
        %346 = vmatprep.subr.mxu0 0.0
        %347 = vmatpush1.msra.mxu0 0.0
        %348 = vmatprep.subr.mxu0 0.0
        %349 = vmatpush1.msra.mxu0 0.0
        %350 = vmatprep.subr.mxu0 0.0
        %351 = vmatpush1.msra.mxu0 0.0
        %352 = vmatprep.subr.mxu0 0.0
        %353 = vmatpush1.msra.mxu0 0.0
        %354 = vmatprep.subr.mxu0 0.0
        %355 = vmatpush1.msra.mxu0 0.0
        %356 = vmatprep.subr.mxu0 0.0
        %357 = vmatpush1.msra.mxu0 0.0
        %358 = vmatprep.subr.mxu0 0.0
        %359 = vmatpush1.msra.mxu0 0.0
        %360 = vmatprep.subr.mxu0 0.0
        %361 = vmatpush1.msra.mxu0 0.0
        %362 = vmatprep.subr.mxu0 0.0
        %363 = vmatpush1.msra.mxu0 %v332
        %364 = vmatprep.subr.mxu0 0.0
        %365 = vmatpush1.msra.mxu0 %v279
        %366 = vmatprep.subr.mxu0 0.0
        %367 = vmatpush2.msra.mxu0 0.0
        %368 = vmatprep.subr.mxu0 0.0
        %369 = vmatpush2.msra.mxu0 0.0
        %370 = vmatprep.subr.mxu0 0.0
        %371 = vmatpush2.msra.mxu0 0.0
        %372 = vmatprep.subr.mxu0 0.0
        %373 = vmatpush2.msra.mxu0 0.0
        %374 = vmatprep.subr.mxu0 0.0
        %375 = vmatpush2.msra.mxu0 0.0
        %376 = vmatprep.subr.mxu0 0.0
        %377 = vmatpush2.msra.mxu0 0.0
        %378 = vmatprep.subr.mxu0 0.0
        %379 = vmatpush2.msra.mxu0 0.0
        %380 = vmatprep.subr.mxu0 0.0
        %381 = vmatpush2.msra.mxu0 0.0
        %382 = vmatprep.subr.mxu0 0.0
        %383 = vmatpush2.msra.mxu0 0.0
        %384 = vmatprep.subr.mxu0 0.0
        %385 = vmatpush2.msra.mxu0 0.0
        %386 = vmatprep.subr.mxu0 0.0
        %387 = vmatpush2.msra.mxu0 0.0
        %388 = vmatprep.subr.mxu0 0.0
        %389 = vmatpush2.msra.mxu0 0.0
        %390 = vmatprep.subr.mxu0 0.0
        %391 = vmatpush2.msra.mxu0 0.0
        %392 = vmatprep.subr.mxu0 0.0
        %393 = vmatpush2.msra.mxu0 0.0
        %394 = vmatprep.subr.mxu0 0.0
        %395 = vmatpush2.msra.mxu0 0.0
        %396 = vmatprep.subr.mxu0 0.0
        %397 = vmatpush2.msra.mxu0 0.0
        %398 = vmatprep.mubr.f32.mxu0 0.0
        %399 = vmatmul.mubr.f32.gmra.mxu0 %v283
        %v400 = vpop.f32.mrf.mxu0
        %v401 = vadd.f32 0.0, %v400
        %v402 = vpop.f32.mrf.mxu0
        %403 = vmatprep.mubr.f32.mxu0 0.0
        %404 = vmatmul.mubr.f32.gmra.mxu0 %v286
        %v405 = vpop.f32.mrf.mxu0
        %v406 = vadd.f32 0.0, %v405
        %v407 = vpop.f32.mrf.mxu0
        %408 = vmatprep.mubr.f32.mxu0 0.0
        %409 = vmatmul.mubr.f32.gmra.mxu0 %v289
        %v410 = vpop.f32.mrf.mxu0
        %v411 = vadd.f32 0.0, %v410
        %v412 = vpop.f32.mrf.mxu0
        %413 = vmatprep.mubr.f32.mxu0 0.0
        %414 = vmatmul.mubr.f32.gmra.mxu0 %v292
        %v415 = vpop.f32.mrf.mxu0
        %v416 = vadd.f32 0.0, %v415
        %v417 = vpop.f32.mrf.mxu0
        %418 = vmatprep.mubr.f32.mxu0 0.0
        %419 = vmatmul.mubr.f32.gmra.mxu0 %v295
        %v420 = vpop.f32.mrf.mxu0
        %v421 = vadd.f32 0.0, %v420
        %v422 = vpop.f32.mrf.mxu0
        %423 = vmatprep.mubr.f32.mxu0 0.0
        %424 = vmatmul.mubr.f32.gmra.mxu0 %v298
        %v425 = vpop.f32.mrf.mxu0
        %v426 = vadd.f32 0.0, %v425
        %v427 = vpop.f32.mrf.mxu0
        %428 = vmatprep.mubr.f32.mxu0 0.0
        %429 = vmatmul.mubr.f32.gmra.mxu0 %v301
        %v430 = vpop.f32.mrf.mxu0
        %v431 = vadd.f32 0.0, %v430
        %v432 = vpop.f32.mrf.mxu0
        %433 = vmatprep.mubr.f32.mxu0 0.0
        %434 = vmatmul.mubr.f32.gmra.mxu0 %v304
        %v435 = vpop.f32.mrf.mxu0
        %v436 = vadd.f32 0.0, %v435
        %v437 = vpop.f32.mrf.mxu0
        %438 = vmatprep.mubr.f32.mxu0 0.0
        %439 = vmatmul.mubr.f32.gmra.mxu0 %v307
        %v440 = vpop.f32.mrf.mxu0
        %v441 = vadd.f32 0.0, %v440
        %v442 = vpop.f32.mrf.mxu0
        %443 = vmatprep.mubr.f32.mxu0 0.0
        %444 = vmatmul.mubr.f32.gmra.mxu0 %v310
        %v445 = vpop.f32.mrf.mxu0
        %v446 = vadd.f32 0.0, %v445
        %v447 = vpop.f32.mrf.mxu0
        %448 = vmatprep.mubr.f32.mxu0 0.0
        %449 = vmatmul.mubr.f32.gmra.mxu0 %v313
        %v450 = vpop.f32.mrf.mxu0
        %v451 = vadd.f32 0.0, %v450
        %v452 = vpop.f32.mrf.mxu0
        %453 = vmatprep.mubr.f32.mxu0 0.0
        %454 = vmatmul.mubr.f32.gmra.mxu0 %v316
        %v455 = vpop.f32.mrf.mxu0
        %v456 = vadd.f32 0.0, %v455
        %v457 = vpop.f32.mrf.mxu0
        %458 = vmatprep.mubr.f32.mxu0 0.0
        %459 = vmatmul.mubr.f32.gmra.mxu0 %v319
        %v460 = vpop.f32.mrf.mxu0
        %v461 = vadd.f32 0.0, %v460
        %v462 = vpop.f32.mrf.mxu0
        %463 = vmatprep.mubr.f32.mxu0 0.0
        %464 = vmatmul.mubr.f32.gmra.mxu0 %v322
        %v465 = vpop.f32.mrf.mxu0
        %v466 = vadd.f32 0.0, %v465
        %v467 = vpop.f32.mrf.mxu0
        %468 = vmatprep.mubr.f32.mxu0 0.0
        %469 = vmatmul.mubr.f32.gmra.mxu0 %v325
        %v470 = vpop.f32.mrf.mxu0
        %v471 = vadd.f32 0.0, %v470
        %v472 = vpop.f32.mrf.mxu0
        %473 = vmatprep.mubr.f32.mxu0 0.0
        %474 = vmatmul.mubr.f32.gmra.mxu0 %v328
        %v475 = vpop.f32.mrf.mxu0
        %v476 = vadd.f32 0.0, %v475
        %v477 = vpop.f32.mrf.mxu0
        %478 = vdwg.mxu0
        %v480 = vsel %vm281, %v241, 0
        %v483 = vsel %vm281, %v242, 0
        %v486 = vsel %vm281, %v243, 0
        %v489 = vsel %vm281, %v244, 0
        %v492 = vsel %vm281, %v245, 0
        %v495 = vsel %vm281, %v246, 0
        %v498 = vsel %vm281, %v247, 0
        %v501 = vsel %vm281, %v248, 0
        %v504 = vsel %vm281, %v249, 0
        %v507 = vsel %vm281, %v250, 0
        %v510 = vsel %vm281, %v251, 0
        %v513 = vsel %vm281, %v252, 0
        %v516 = vsel %vm281, %v253, 0
        %v519 = vsel %vm281, %v254, 0
        %v522 = vsel %vm281, %v255, 0
        %v525 = vsel %vm281, %v256, 0
        %v528 = vsel %vm330, %v258, 0
        %530 = vmatprep.subr.mxu0 0.0
        %531 = vmatpush1.msra.mxu0 0.0
        %532 = vmatprep.subr.mxu0 0.0
        %533 = vmatpush1.msra.mxu0 0.0
        %534 = vmatprep.subr.mxu0 0.0
        %535 = vmatpush1.msra.mxu0 0.0
        %536 = vmatprep.subr.mxu0 0.0
        %537 = vmatpush1.msra.mxu0 0.0
        %538 = vmatprep.subr.mxu0 0.0
        %539 = vmatpush1.msra.mxu0 0.0
        %540 = vmatprep.subr.mxu0 0.0
        %541 = vmatpush1.msra.mxu0 0.0
        %542 = vmatprep.subr.mxu0 0.0
        %543 = vmatpush1.msra.mxu0 0.0
        %544 = vmatprep.subr.mxu0 0.0
        %545 = vmatpush1.msra.mxu0 0.0
        %546 = vmatprep.subr.mxu0 0.0
        %547 = vmatpush1.msra.mxu0 0.0
        %548 = vmatprep.subr.mxu0 0.0
        %549 = vmatpush1.msra.mxu0 0.0
        %550 = vmatprep.subr.mxu0 0.0
        %551 = vmatpush1.msra.mxu0 0.0
        %552 = vmatprep.subr.mxu0 0.0
        %553 = vmatpush1.msra.mxu0 0.0
        %554 = vmatprep.subr.mxu0 0.0
        %555 = vmatpush1.msra.mxu0 0.0
        %556 = vmatprep.subr.mxu0 0.0
        %557 = vmatpush1.msra.mxu0 0.0
        %558 = vmatprep.subr.mxu0 0.0
        %559 = vmatpush1.msra.mxu0 %v528
        %560 = vmatprep.subr.mxu0 0.0
        %561 = vmatpush1.msra.mxu0 %v257
        %562 = vmatprep.subr.mxu0 0.0
        %563 = vmatpush2.msra.mxu0 0.0
        %564 = vmatprep.subr.mxu0 0.0
        %565 = vmatpush2.msra.mxu0 0.0
        %566 = vmatprep.subr.mxu0 0.0
        %567 = vmatpush2.msra.mxu0 0.0
        %568 = vmatprep.subr.mxu0 0.0
        %569 = vmatpush2.msra.mxu0 0.0
        %570 = vmatprep.subr.mxu0 0.0
        %571 = vmatpush2.msra.mxu0 0.0
        %572 = vmatprep.subr.mxu0 0.0
        %573 = vmatpush2.msra.mxu0 0.0
        %574 = vmatprep.subr.mxu0 0.0
        %575 = vmatpush2.msra.mxu0 0.0
        %576 = vmatprep.subr.mxu0 0.0
        %577 = vmatpush2.msra.mxu0 0.0
        %578 = vmatprep.subr.mxu0 0.0
        %579 = vmatpush2.msra.mxu0 0.0
        %580 = vmatprep.subr.mxu0 0.0
        %581 = vmatpush2.msra.mxu0 0.0
        %582 = vmatprep.subr.mxu0 0.0
        %583 = vmatpush2.msra.mxu0 0.0
        %584 = vmatprep.subr.mxu0 0.0
        %585 = vmatpush2.msra.mxu0 0.0
        %586 = vmatprep.subr.mxu0 0.0
        %587 = vmatpush2.msra.mxu0 0.0
        %588 = vmatprep.subr.mxu0 0.0
        %589 = vmatpush2.msra.mxu0 0.0
        %590 = vmatprep.subr.mxu0 0.0
        %591 = vmatpush2.msra.mxu0 0.0
        %592 = vmatprep.subr.mxu0 0.0
        %593 = vmatpush2.msra.mxu0 0.0
        %594 = vmatprep.mubr.f32.mxu0 0.0
        %595 = vmatmul.mubr.f32.gmra.mxu0 %v480
        %v596 = vpop.f32.mrf.mxu0
        %v597 = vadd.f32 %v401, %v596
        %v598 = vpop.f32.mrf.mxu0
        %599 = vmatprep.mubr.f32.mxu0 0.0
        %600 = vmatmul.mubr.f32.gmra.mxu0 %v483
        %v601 = vpop.f32.mrf.mxu0
        %v602 = vadd.f32 %v406, %v601
        %v603 = vpop.f32.mrf.mxu0
        %604 = vmatprep.mubr.f32.mxu0 0.0
        %605 = vmatmul.mubr.f32.gmra.mxu0 %v486
        %v606 = vpop.f32.mrf.mxu0
        %v607 = vadd.f32 %v411, %v606
        %v608 = vpop.f32.mrf.mxu0
        %609 = vmatprep.mubr.f32.mxu0 0.0
        %610 = vmatmul.mubr.f32.gmra.mxu0 %v489
        %v611 = vpop.f32.mrf.mxu0
        %v612 = vadd.f32 %v416, %v611
        %v613 = vpop.f32.mrf.mxu0
        %614 = vmatprep.mubr.f32.mxu0 0.0
        %615 = vmatmul.mubr.f32.gmra.mxu0 %v492
        %v616 = vpop.f32.mrf.mxu0
        %v617 = vadd.f32 %v421, %v616
        %v618 = vpop.f32.mrf.mxu0
        %619 = vmatprep.mubr.f32.mxu0 0.0
        %620 = vmatmul.mubr.f32.gmra.mxu0 %v495
        %v621 = vpop.f32.mrf.mxu0
        %v622 = vadd.f32 %v426, %v621
        %v623 = vpop.f32.mrf.mxu0
        %624 = vmatprep.mubr.f32.mxu0 0.0
        %625 = vmatmul.mubr.f32.gmra.mxu0 %v498
        %v626 = vpop.f32.mrf.mxu0
        %v627 = vadd.f32 %v431, %v626
        %v628 = vpop.f32.mrf.mxu0
        %629 = vmatprep.mubr.f32.mxu0 0.0
        %630 = vmatmul.mubr.f32.gmra.mxu0 %v501
        %v631 = vpop.f32.mrf.mxu0
        %v632 = vadd.f32 %v436, %v631
        %v633 = vpop.f32.mrf.mxu0
        %634 = vmatprep.mubr.f32.mxu0 0.0
        %635 = vmatmul.mubr.f32.gmra.mxu0 %v504
        %v636 = vpop.f32.mrf.mxu0
        %v637 = vadd.f32 %v441, %v636
        %v638 = vpop.f32.mrf.mxu0
        %639 = vmatprep.mubr.f32.mxu0 0.0
        %640 = vmatmul.mubr.f32.gmra.mxu0 %v507
        %v641 = vpop.f32.mrf.mxu0
        %v642 = vadd.f32 %v446, %v641
        %v643 = vpop.f32.mrf.mxu0
        %644 = vmatprep.mubr.f32.mxu0 0.0
        %645 = vmatmul.mubr.f32.gmra.mxu0 %v510
        %v646 = vpop.f32.mrf.mxu0
        %v647 = vadd.f32 %v451, %v646
        %v648 = vpop.f32.mrf.mxu0
        %649 = vmatprep.mubr.f32.mxu0 0.0
        %650 = vmatmul.mubr.f32.gmra.mxu0 %v513
        %v651 = vpop.f32.mrf.mxu0
        %v652 = vadd.f32 %v456, %v651
        %v653 = vpop.f32.mrf.mxu0
        %654 = vmatprep.mubr.f32.mxu0 0.0
        %655 = vmatmul.mubr.f32.gmra.mxu0 %v516
        %v656 = vpop.f32.mrf.mxu0
        %v657 = vadd.f32 %v461, %v656
        %v658 = vpop.f32.mrf.mxu0
        %659 = vmatprep.mubr.f32.mxu0 0.0
        %660 = vmatmul.mubr.f32.gmra.mxu0 %v519
        %v661 = vpop.f32.mrf.mxu0
        %v662 = vadd.f32 %v466, %v661
        %v663 = vpop.f32.mrf.mxu0
        %664 = vmatprep.mubr.f32.mxu0 0.0
        %665 = vmatmul.mubr.f32.gmra.mxu0 %v522
        %v666 = vpop.f32.mrf.mxu0
        %v667 = vadd.f32 %v471, %v666
        %v668 = vpop.f32.mrf.mxu0
        %669 = vmatprep.mubr.f32.mxu0 0.0
        %670 = vmatmul.mubr.f32.gmra.mxu0 %v525
        %v671 = vpop.f32.mrf.mxu0
        %v672 = vadd.f32 %v476, %v671
        %v673 = vpop.f32.mrf.mxu0
        %674 = vdwg.mxu0
        %s675 = sadd.s32 %s238, 2
        %s676 = smul.u32 %s675, 16
        %s677 = scalar_lea.vmem %s236, %s676
        %v678 = vld [vmem:[%s677] sm:$0xff]
        %v679 = vld [vmem:[%s677 + $0x8] sm:$0xff]
        %v680 = vld [vmem:[%s677 + $0x10] sm:$0xff]
        %v681 = vld [vmem:[%s677 + $0x18] sm:$0xff]
        %v682 = vld [vmem:[%s677 + $0x20] sm:$0xff]
        %v683 = vld [vmem:[%s677 + $0x28] sm:$0xff]
        %v684 = vld [vmem:[%s677 + $0x30] sm:$0xff]
        %v685 = vld [vmem:[%s677 + $0x38] sm:$0xff]
        %v686 = vld [vmem:[%s677 + $0x40] sm:$0xff]
        %v687 = vld [vmem:[%s677 + $0x48] sm:$0xff]
        %v688 = vld [vmem:[%s677 + $0x50] sm:$0xff]
        %v689 = vld [vmem:[%s677 + $0x58] sm:$0xff]
        %v690 = vld [vmem:[%s677 + $0x60] sm:$0xff]
        %v691 = vld [vmem:[%s677 + $0x68] sm:$0xff]
        %v692 = vld [vmem:[%s677 + $0x70] sm:$0xff]
        %v693 = vld [vmem:[%s677 + $0x78] sm:$0xff]
        %s694 = scalar_lea.vmem %s1, 32
        %v695 = vld [vmem:[%s694] sm:$0xff]
        %v696 = vld [vmem:[%s694 + $0x8] sm:$0xf]
        %v698 = vsel %vm281, %v678, 0
        %v701 = vsel %vm281, %v679, 0
        %v704 = vsel %vm281, %v680, 0
        %v707 = vsel %vm281, %v681, 0
        %v710 = vsel %vm281, %v682, 0
        %v713 = vsel %vm281, %v683, 0
        %v716 = vsel %vm281, %v684, 0
        %v719 = vsel %vm281, %v685, 0
        %v722 = vsel %vm281, %v686, 0
        %v725 = vsel %vm281, %v687, 0
        %v728 = vsel %vm281, %v688, 0
        %v731 = vsel %vm281, %v689, 0
        %v734 = vsel %vm281, %v690, 0
        %v737 = vsel %vm281, %v691, 0
        %v740 = vsel %vm281, %v692, 0
        %v743 = vsel %vm281, %v693, 0
        %v746 = vsel %vm330, %v696, 0
        %748 = vmatprep.subr.mxu0 0.0
        %749 = vmatpush1.msra.mxu0 0.0
        %750 = vmatprep.subr.mxu0 0.0
        %751 = vmatpush1.msra.mxu0 0.0
        %752 = vmatprep.subr.mxu0 0.0
        %753 = vmatpush1.msra.mxu0 0.0
        %754 = vmatprep.subr.mxu0 0.0
        %755 = vmatpush1.msra.mxu0 0.0
        %756 = vmatprep.subr.mxu0 0.0
        %757 = vmatpush1.msra.mxu0 0.0
        %758 = vmatprep.subr.mxu0 0.0
        %759 = vmatpush1.msra.mxu0 0.0
        %760 = vmatprep.subr.mxu0 0.0
        %761 = vmatpush1.msra.mxu0 0.0
        %762 = vmatprep.subr.mxu0 0.0
        %763 = vmatpush1.msra.mxu0 0.0
        %764 = vmatprep.subr.mxu0 0.0
        %765 = vmatpush1.msra.mxu0 0.0
        %766 = vmatprep.subr.mxu0 0.0
        %767 = vmatpush1.msra.mxu0 0.0
        %768 = vmatprep.subr.mxu0 0.0
        %769 = vmatpush1.msra.mxu0 0.0
        %770 = vmatprep.subr.mxu0 0.0
        %771 = vmatpush1.msra.mxu0 0.0
        %772 = vmatprep.subr.mxu0 0.0
        %773 = vmatpush1.msra.mxu0 0.0
        %774 = vmatprep.subr.mxu0 0.0
        %775 = vmatpush1.msra.mxu0 0.0
        %776 = vmatprep.subr.mxu0 0.0
        %777 = vmatpush1.msra.mxu0 %v746
        %778 = vmatprep.subr.mxu0 0.0
        %779 = vmatpush1.msra.mxu0 %v695
        %780 = vmatprep.subr.mxu0 0.0
        %781 = vmatpush2.msra.mxu0 0.0
        %782 = vmatprep.subr.mxu0 0.0
        %783 = vmatpush2.msra.mxu0 0.0
        %784 = vmatprep.subr.mxu0 0.0
        %785 = vmatpush2.msra.mxu0 0.0
        %786 = vmatprep.subr.mxu0 0.0
        %787 = vmatpush2.msra.mxu0 0.0
        %788 = vmatprep.subr.mxu0 0.0
        %789 = vmatpush2.msra.mxu0 0.0
        %790 = vmatprep.subr.mxu0 0.0
        %791 = vmatpush2.msra.mxu0 0.0
        %792 = vmatprep.subr.mxu0 0.0
        %793 = vmatpush2.msra.mxu0 0.0
        %794 = vmatprep.subr.mxu0 0.0
        %795 = vmatpush2.msra.mxu0 0.0
        %796 = vmatprep.subr.mxu0 0.0
        %797 = vmatpush2.msra.mxu0 0.0
        %798 = vmatprep.subr.mxu0 0.0
        %799 = vmatpush2.msra.mxu0 0.0
        %800 = vmatprep.subr.mxu0 0.0
        %801 = vmatpush2.msra.mxu0 0.0
        %802 = vmatprep.subr.mxu0 0.0
        %803 = vmatpush2.msra.mxu0 0.0
        %804 = vmatprep.subr.mxu0 0.0
        %805 = vmatpush2.msra.mxu0 0.0
        %806 = vmatprep.subr.mxu0 0.0
        %807 = vmatpush2.msra.mxu0 0.0
        %808 = vmatprep.subr.mxu0 0.0
        %809 = vmatpush2.msra.mxu0 0.0
        %810 = vmatprep.subr.mxu0 0.0
        %811 = vmatpush2.msra.mxu0 0.0
        %812 = vmatprep.mubr.f32.mxu0 0.0
        %813 = vmatmul.mubr.f32.gmra.mxu0 %v698
        %v814 = vpop.f32.mrf.mxu0
        %v815 = vadd.f32 0.0, %v814
        %v816 = vpop.f32.mrf.mxu0
        %817 = vmatprep.mubr.f32.mxu0 0.0
        %818 = vmatmul.mubr.f32.gmra.mxu0 %v701
        %v819 = vpop.f32.mrf.mxu0
        %v820 = vadd.f32 0.0, %v819
        %v821 = vpop.f32.mrf.mxu0
        %822 = vmatprep.mubr.f32.mxu0 0.0
        %823 = vmatmul.mubr.f32.gmra.mxu0 %v704
        %v824 = vpop.f32.mrf.mxu0
        %v825 = vadd.f32 0.0, %v824
        %v826 = vpop.f32.mrf.mxu0
        %827 = vmatprep.mubr.f32.mxu0 0.0
        %828 = vmatmul.mubr.f32.gmra.mxu0 %v707
        %v829 = vpop.f32.mrf.mxu0
        %v830 = vadd.f32 0.0, %v829
        %v831 = vpop.f32.mrf.mxu0
        %832 = vmatprep.mubr.f32.mxu0 0.0
        %833 = vmatmul.mubr.f32.gmra.mxu0 %v710
        %v834 = vpop.f32.mrf.mxu0
        %v835 = vadd.f32 0.0, %v834
        %v836 = vpop.f32.mrf.mxu0
        %837 = vmatprep.mubr.f32.mxu0 0.0
        %838 = vmatmul.mubr.f32.gmra.mxu0 %v713
        %v839 = vpop.f32.mrf.mxu0
        %v840 = vadd.f32 0.0, %v839
        %v841 = vpop.f32.mrf.mxu0
        %842 = vmatprep.mubr.f32.mxu0 0.0
        %843 = vmatmul.mubr.f32.gmra.mxu0 %v716
        %v844 = vpop.f32.mrf.mxu0
        %v845 = vadd.f32 0.0, %v844
        %v846 = vpop.f32.mrf.mxu0
        %847 = vmatprep.mubr.f32.mxu0 0.0
        %848 = vmatmul.mubr.f32.gmra.mxu0 %v719
        %v849 = vpop.f32.mrf.mxu0
        %v850 = vadd.f32 0.0, %v849
        %v851 = vpop.f32.mrf.mxu0
        %852 = vmatprep.mubr.f32.mxu0 0.0
        %853 = vmatmul.mubr.f32.gmra.mxu0 %v722
        %v854 = vpop.f32.mrf.mxu0
        %v855 = vadd.f32 0.0, %v854
        %v856 = vpop.f32.mrf.mxu0
        %857 = vmatprep.mubr.f32.mxu0 0.0
        %858 = vmatmul.mubr.f32.gmra.mxu0 %v725
        %v859 = vpop.f32.mrf.mxu0
        %v860 = vadd.f32 0.0, %v859
        %v861 = vpop.f32.mrf.mxu0
        %862 = vmatprep.mubr.f32.mxu0 0.0
        %863 = vmatmul.mubr.f32.gmra.mxu0 %v728
        %v864 = vpop.f32.mrf.mxu0
        %v865 = vadd.f32 0.0, %v864
        %v866 = vpop.f32.mrf.mxu0
        %867 = vmatprep.mubr.f32.mxu0 0.0
        %868 = vmatmul.mubr.f32.gmra.mxu0 %v731
        %v869 = vpop.f32.mrf.mxu0
        %v870 = vadd.f32 0.0, %v869
        %v871 = vpop.f32.mrf.mxu0
        %872 = vmatprep.mubr.f32.mxu0 0.0
        %873 = vmatmul.mubr.f32.gmra.mxu0 %v734
        %v874 = vpop.f32.mrf.mxu0
        %v875 = vadd.f32 0.0, %v874
        %v876 = vpop.f32.mrf.mxu0
        %877 = vmatprep.mubr.f32.mxu0 0.0
        %878 = vmatmul.mubr.f32.gmra.mxu0 %v737
        %v879 = vpop.f32.mrf.mxu0
        %v880 = vadd.f32 0.0, %v879
        %v881 = vpop.f32.mrf.mxu0
        %882 = vmatprep.mubr.f32.mxu0 0.0
        %883 = vmatmul.mubr.f32.gmra.mxu0 %v740
        %v884 = vpop.f32.mrf.mxu0
        %v885 = vadd.f32 0.0, %v884
        %v886 = vpop.f32.mrf.mxu0
        %887 = vmatprep.mubr.f32.mxu0 0.0
        %888 = vmatmul.mubr.f32.gmra.mxu0 %v743
        %v889 = vpop.f32.mrf.mxu0
        %v890 = vadd.f32 0.0, %v889
        %v891 = vpop.f32.mrf.mxu0
        %892 = vdwg.mxu0
        %v893 = vadd.f32 %v597, %v815
        %v894 = vadd.f32 %v602, %v820
        %v895 = vadd.f32 %v607, %v825
        %v896 = vadd.f32 %v612, %v830
        %v897 = vadd.f32 %v617, %v835
        %v898 = vadd.f32 %v622, %v840
        %v899 = vadd.f32 %v627, %v845
        %v900 = vadd.f32 %v632, %v850
        %v901 = vadd.f32 %v637, %v855
        %v902 = vadd.f32 %v642, %v860
        %v903 = vadd.f32 %v647, %v865
        %v904 = vadd.f32 %v652, %v870
        %v905 = vadd.f32 %v657, %v875
        %v906 = vadd.f32 %v662, %v880
        %v907 = vadd.f32 %v667, %v885
        %v908 = vadd.f32 %v672, %v890
        %v909 = vld [vmem:[%s2] sm:$0x1]
        %v911 = vlaneseq
        %v912 = vshrl.u32 %v911, 7
        %v913 = vsub.s32 0, %v912
        %v914 = vrot.slane %v909, %v913
        %v916 = vadd.f32 %v893, %v914
        %v917 = vadd.f32 %v894, %v914
        %v918 = vadd.f32 %v895, %v914
        %v919 = vadd.f32 %v896, %v914
        %v920 = vadd.f32 %v897, %v914
        %v921 = vadd.f32 %v898, %v914
        %v922 = vadd.f32 %v899, %v914
        %v923 = vadd.f32 %v900, %v914
        %v924 = vadd.f32 %v901, %v914
        %v925 = vadd.f32 %v902, %v914
        %v926 = vadd.f32 %v903, %v914
        %v927 = vadd.f32 %v904, %v914
        %v928 = vadd.f32 %v905, %v914
        %v929 = vadd.f32 %v906, %v914
        %v930 = vadd.f32 %v907, %v914
        %v931 = vadd.f32 %v908, %v914
        %vm932 = vcmp.gt.f32.partialorder %v916, 0.0
        %vm933 = vcmp.gt.f32.partialorder %v917, 0.0
        %vm934 = vcmp.gt.f32.partialorder %v918, 0.0
        %vm935 = vcmp.gt.f32.partialorder %v919, 0.0
        %vm936 = vcmp.gt.f32.partialorder %v920, 0.0
        %vm937 = vcmp.gt.f32.partialorder %v921, 0.0
        %vm938 = vcmp.gt.f32.partialorder %v922, 0.0
        %vm939 = vcmp.gt.f32.partialorder %v923, 0.0
        %vm940 = vcmp.gt.f32.partialorder %v924, 0.0
        %vm941 = vcmp.gt.f32.partialorder %v925, 0.0
        %vm942 = vcmp.gt.f32.partialorder %v926, 0.0
        %vm943 = vcmp.gt.f32.partialorder %v927, 0.0
        %vm944 = vcmp.gt.f32.partialorder %v928, 0.0
        %vm945 = vcmp.gt.f32.partialorder %v929, 0.0
        %vm946 = vcmp.gt.f32.partialorder %v930, 0.0
        %vm947 = vcmp.gt.f32.partialorder %v931, 0.0
        %v948 = vmul.f32 %v916, 0.1
        %v949 = vmul.f32 %v917, 0.1
        %v950 = vmul.f32 %v918, 0.1
        %v951 = vmul.f32 %v919, 0.1
        %v952 = vmul.f32 %v920, 0.1
        %v953 = vmul.f32 %v921, 0.1
        %v954 = vmul.f32 %v922, 0.1
        %v955 = vmul.f32 %v923, 0.1
        %v956 = vmul.f32 %v924, 0.1
        %v957 = vmul.f32 %v925, 0.1
        %v958 = vmul.f32 %v926, 0.1
        %v959 = vmul.f32 %v927, 0.1
        %v960 = vmul.f32 %v928, 0.1
        %v961 = vmul.f32 %v929, 0.1
        %v962 = vmul.f32 %v930, 0.1
        %v963 = vmul.f32 %v931, 0.1
        %v964 = vsel %vm932, %v916, %v948
        %v965 = vsel %vm933, %v917, %v949
        %v966 = vsel %vm934, %v918, %v950
        %v967 = vsel %vm935, %v919, %v951
        %v968 = vsel %vm936, %v920, %v952
        %v969 = vsel %vm937, %v921, %v953
        %v970 = vsel %vm938, %v922, %v954
        %v971 = vsel %vm939, %v923, %v955
        %v972 = vsel %vm940, %v924, %v956
        %v973 = vsel %vm941, %v925, %v957
        %v974 = vsel %vm942, %v926, %v958
        %v975 = vsel %vm943, %v927, %v959
        %v976 = vsel %vm944, %v928, %v960
        %v977 = vsel %vm945, %v929, %v961
        %v978 = vsel %vm946, %v930, %v962
        %v979 = vsel %vm947, %v931, %v963
        %v980 = vld [vmem:[%s3] sm:$0xff]
        %v981 = vld [vmem:[%s4] sm:$0x1]
        %v983 = vlaneseq
        %v984 = vshrl.u32 %v983, 7
        %v985 = vsub.s32 0, %v984
        %v986 = vrot.slane %v981, %v985
        %vm988 = vcmask 64512
        %v990 = vsel %vm988, %v964, 0
        %v993 = vsel %vm988, %v965, 0
        %v996 = vsel %vm988, %v966, 0
        %v999 = vsel %vm988, %v967, 0
        %v1002 = vsel %vm988, %v968, 0
        %v1005 = vsel %vm988, %v969, 0
        %v1008 = vsel %vm988, %v970, 0
        %v1011 = vsel %vm988, %v971, 0
        %v1014 = vsel %vm988, %v972, 0
        %v1017 = vsel %vm988, %v973, 0
        %v1020 = vsel %vm988, %v974, 0
        %v1023 = vsel %vm988, %v975, 0
        %v1026 = vsel %vm988, %v976, 0
        %v1029 = vsel %vm988, %v977, 0
        %v1032 = vsel %vm988, %v978, 0
        %v1035 = vsel %vm988, %v979, 0
        %1037 = vmatprep.subr.mxu0 0.0
        %1038 = vmatpush1.msra.mxu0 0.0
        %1039 = vmatprep.subr.mxu0 0.0
        %1040 = vmatpush1.msra.mxu0 0.0
        %1041 = vmatprep.subr.mxu0 0.0
        %1042 = vmatpush1.msra.mxu0 0.0
        %1043 = vmatprep.subr.mxu0 0.0
        %1044 = vmatpush1.msra.mxu0 0.0
        %1045 = vmatprep.subr.mxu0 0.0
        %1046 = vmatpush1.msra.mxu0 0.0
        %1047 = vmatprep.subr.mxu0 0.0
        %1048 = vmatpush1.msra.mxu0 0.0
        %1049 = vmatprep.subr.mxu0 0.0
        %1050 = vmatpush1.msra.mxu0 0.0
        %1051 = vmatprep.subr.mxu0 0.0
        %1052 = vmatpush1.msra.mxu0 0.0
        %1053 = vmatprep.subr.mxu0 0.0
        %1054 = vmatpush1.msra.mxu0 0.0
        %1055 = vmatprep.subr.mxu0 0.0
        %1056 = vmatpush1.msra.mxu0 0.0
        %1057 = vmatprep.subr.mxu0 0.0
        %1058 = vmatpush1.msra.mxu0 0.0
        %1059 = vmatprep.subr.mxu0 0.0
        %1060 = vmatpush1.msra.mxu0 0.0
        %1061 = vmatprep.subr.mxu0 0.0
        %1062 = vmatpush1.msra.mxu0 0.0
        %1063 = vmatprep.subr.mxu0 0.0
        %1064 = vmatpush1.msra.mxu0 0.0
        %1065 = vmatprep.subr.mxu0 0.0
        %1066 = vmatpush1.msra.mxu0 0.0
        %1067 = vmatprep.subr.mxu0 0.0
        %1068 = vmatpush1.msra.mxu0 %v980
        %1069 = vmatprep.subr.mxu0 0.0
        %1070 = vmatpush2.msra.mxu0 0.0
        %1071 = vmatprep.subr.mxu0 0.0
        %1072 = vmatpush2.msra.mxu0 0.0
        %1073 = vmatprep.subr.mxu0 0.0
        %1074 = vmatpush2.msra.mxu0 0.0
        %1075 = vmatprep.subr.mxu0 0.0
        %1076 = vmatpush2.msra.mxu0 0.0
        %1077 = vmatprep.subr.mxu0 0.0
        %1078 = vmatpush2.msra.mxu0 0.0
        %1079 = vmatprep.subr.mxu0 0.0
        %1080 = vmatpush2.msra.mxu0 0.0
        %1081 = vmatprep.subr.mxu0 0.0
        %1082 = vmatpush2.msra.mxu0 0.0
        %1083 = vmatprep.subr.mxu0 0.0
        %1084 = vmatpush2.msra.mxu0 0.0
        %1085 = vmatprep.subr.mxu0 0.0
        %1086 = vmatpush2.msra.mxu0 0.0
        %1087 = vmatprep.subr.mxu0 0.0
        %1088 = vmatpush2.msra.mxu0 0.0
        %1089 = vmatprep.subr.mxu0 0.0
        %1090 = vmatpush2.msra.mxu0 0.0
        %1091 = vmatprep.subr.mxu0 0.0
        %1092 = vmatpush2.msra.mxu0 0.0
        %1093 = vmatprep.subr.mxu0 0.0
        %1094 = vmatpush2.msra.mxu0 0.0
        %1095 = vmatprep.subr.mxu0 0.0
        %1096 = vmatpush2.msra.mxu0 0.0
        %1097 = vmatprep.subr.mxu0 0.0
        %1098 = vmatpush2.msra.mxu0 0.0
        %1099 = vmatprep.subr.mxu0 0.0
        %1100 = vmatpush2.msra.mxu0 0.0
        %1101 = vmatprep.mubr.f32.mxu0 0.0
        %1102 = vmatmul.mubr.f32.gmra.mxu0 %v990
        %v1103 = vpop.f32.mrf.mxu0
        %v1104 = vadd.f32 %v986, %v1103
        %v1105 = vpop.f32.mrf.mxu0
        %1106 = vmatprep.mubr.f32.mxu0 0.0
        %1107 = vmatmul.mubr.f32.gmra.mxu0 %v993
        %v1108 = vpop.f32.mrf.mxu0
        %v1109 = vadd.f32 %v986, %v1108
        %v1110 = vpop.f32.mrf.mxu0
        %1111 = vmatprep.mubr.f32.mxu0 0.0
        %1112 = vmatmul.mubr.f32.gmra.mxu0 %v996
        %v1113 = vpop.f32.mrf.mxu0
        %v1114 = vadd.f32 %v986, %v1113
        %v1115 = vpop.f32.mrf.mxu0
        %1116 = vmatprep.mubr.f32.mxu0 0.0
        %1117 = vmatmul.mubr.f32.gmra.mxu0 %v999
        %v1118 = vpop.f32.mrf.mxu0
        %v1119 = vadd.f32 %v986, %v1118
        %v1120 = vpop.f32.mrf.mxu0
        %1121 = vmatprep.mubr.f32.mxu0 0.0
        %1122 = vmatmul.mubr.f32.gmra.mxu0 %v1002
        %v1123 = vpop.f32.mrf.mxu0
        %v1124 = vadd.f32 %v986, %v1123
        %v1125 = vpop.f32.mrf.mxu0
        %1126 = vmatprep.mubr.f32.mxu0 0.0
        %1127 = vmatmul.mubr.f32.gmra.mxu0 %v1005
        %v1128 = vpop.f32.mrf.mxu0
        %v1129 = vadd.f32 %v986, %v1128
        %v1130 = vpop.f32.mrf.mxu0
        %1131 = vmatprep.mubr.f32.mxu0 0.0
        %1132 = vmatmul.mubr.f32.gmra.mxu0 %v1008
        %v1133 = vpop.f32.mrf.mxu0
        %v1134 = vadd.f32 %v986, %v1133
        %v1135 = vpop.f32.mrf.mxu0
        %1136 = vmatprep.mubr.f32.mxu0 0.0
        %1137 = vmatmul.mubr.f32.gmra.mxu0 %v1011
        %v1138 = vpop.f32.mrf.mxu0
        %v1139 = vadd.f32 %v986, %v1138
        %v1140 = vpop.f32.mrf.mxu0
        %1141 = vmatprep.mubr.f32.mxu0 0.0
        %1142 = vmatmul.mubr.f32.gmra.mxu0 %v1014
        %v1143 = vpop.f32.mrf.mxu0
        %v1144 = vadd.f32 %v986, %v1143
        %v1145 = vpop.f32.mrf.mxu0
        %1146 = vmatprep.mubr.f32.mxu0 0.0
        %1147 = vmatmul.mubr.f32.gmra.mxu0 %v1017
        %v1148 = vpop.f32.mrf.mxu0
        %v1149 = vadd.f32 %v986, %v1148
        %v1150 = vpop.f32.mrf.mxu0
        %1151 = vmatprep.mubr.f32.mxu0 0.0
        %1152 = vmatmul.mubr.f32.gmra.mxu0 %v1020
        %v1153 = vpop.f32.mrf.mxu0
        %v1154 = vadd.f32 %v986, %v1153
        %v1155 = vpop.f32.mrf.mxu0
        %1156 = vmatprep.mubr.f32.mxu0 0.0
        %1157 = vmatmul.mubr.f32.gmra.mxu0 %v1023
        %v1158 = vpop.f32.mrf.mxu0
        %v1159 = vadd.f32 %v986, %v1158
        %v1160 = vpop.f32.mrf.mxu0
        %1161 = vmatprep.mubr.f32.mxu0 0.0
        %1162 = vmatmul.mubr.f32.gmra.mxu0 %v1026
        %v1163 = vpop.f32.mrf.mxu0
        %v1164 = vadd.f32 %v986, %v1163
        %v1165 = vpop.f32.mrf.mxu0
        %1166 = vmatprep.mubr.f32.mxu0 0.0
        %1167 = vmatmul.mubr.f32.gmra.mxu0 %v1029
        %v1168 = vpop.f32.mrf.mxu0
        %v1169 = vadd.f32 %v986, %v1168
        %v1170 = vpop.f32.mrf.mxu0
        %1171 = vmatprep.mubr.f32.mxu0 0.0
        %1172 = vmatmul.mubr.f32.gmra.mxu0 %v1032
        %v1173 = vpop.f32.mrf.mxu0
        %v1174 = vadd.f32 %v986, %v1173
        %v1175 = vpop.f32.mrf.mxu0
        %1176 = vmatprep.mubr.f32.mxu0 0.0
        %1177 = vmatmul.mubr.f32.gmra.mxu0 %v1035
        %v1178 = vpop.f32.mrf.mxu0
        %v1179 = vadd.f32 %v986, %v1178
        %v1180 = vpop.f32.mrf.mxu0
        %1181 = vdwg.mxu0
        %1182 = vst [vmem:[%s231] sm:$0xff] %v1104
        %1183 = vst [vmem:[%s231 + $0x8] sm:$0xff] %v1109
        %1184 = vst [vmem:[%s231 + $0x10] sm:$0xff] %v1114
        %1185 = vst [vmem:[%s231 + $0x18] sm:$0xff] %v1119
        %1186 = vst [vmem:[%s231 + $0x20] sm:$0xff] %v1124
        %1187 = vst [vmem:[%s231 + $0x28] sm:$0xff] %v1129
        %1188 = vst [vmem:[%s231 + $0x30] sm:$0xff] %v1134
        %1189 = vst [vmem:[%s231 + $0x38] sm:$0xff] %v1139
        %1190 = vst [vmem:[%s231 + $0x40] sm:$0xff] %v1144
        %1191 = vst [vmem:[%s231 + $0x48] sm:$0xff] %v1149
        %1192 = vst [vmem:[%s231 + $0x50] sm:$0xff] %v1154
        %1193 = vst [vmem:[%s231 + $0x58] sm:$0xff] %v1159
        %1194 = vst [vmem:[%s231 + $0x60] sm:$0xff] %v1164
        %1195 = vst [vmem:[%s231 + $0x68] sm:$0xff] %v1169
        %1196 = vst [vmem:[%s231 + $0x70] sm:$0xff] %v1174
        %1197 = vst [vmem:[%s231 + $0x78] sm:$0xff] %v1179
        %s1198 = sand.u32 %s151, 1
        %s1199 = scalar_lea.sflag [#allocation3], %s1198
        %s1200 = sand.u32 %s151, 1
        %s1201 = smul.addr %s1200, 128
        %s1202 = scalar_lea.vmem [#allocation2], %s1201
        // Predicated region
        $region41: #{tpu_custom_call.1} parent=39 // pred_check
          %p1203 = pneg %p161
        $region42: #{tpu_custom_call.1} parent=39 // pred_check_branch
          %1205 = sbr.rel (%p1203) target = $region44
        $region43: #{tpu_custom_call.1} parent=39 // pred_region
          %s1206 = smul.u32 8, %s24
          %s1208 = ssub.s32 2048, 2048
          %1209 = vsyncadd %s1199, %s1208
          %s1210 = smul.addr %s1206, 2
          %s1211 = smul.addr %s23, 32
          %s1212 = sadd.s32 %s1210, %s1211
          %s1213 = smul.addr %s1212, 128
          %s1214 = scalar_lea.hbm %s5, %s1213
          %s1215 = sshll.u32 %s1202, 4
          %s1216 = int_to_ptr.vmem [resolvable:$true] %s1215
          %1221 = dma.vmem_to_hbm [thread:$0]  %s1216, 2048, %s1214, %s1199, 128, 128, 8
        $region44: #{tpu_custom_call.1} parent=39 // pred_fallthru
          _
      $region40: #{tpu_custom_call.1} parent=5 // pred_fallthru
        _
      %p1222 = scmp.le.s32.totalorder 2, %s14
      // Predicated region
      $region45: #{tpu_custom_call.1} parent=5 // pred_check
        %p1223 = pneg %p1222
      $region46: #{tpu_custom_call.1} parent=5 // pred_check_branch
        %1225 = sbr.rel (%p1223) target = $region48
      $region47: #{tpu_custom_call.1} parent=5 // pred_region
        %s1226 = ssub.s32 %s14, 2
        // Predicated region
        $region49: #{tpu_custom_call.1} parent=47 // pred_check
          %p1227 = pneg %p167
        $region50: #{tpu_custom_call.1} parent=47 // pred_check_branch
          %1229 = sbr.rel (%p1227) target = $region52
        $region51: #{tpu_custom_call.1} parent=47 // pred_region
          %s1230 = sand.u32 %s152, 1
          %s1231 = scalar_lea.sflag [#allocation3], %s1230
          %s1232 = sand.u32 %s152, 1
          %s1233 = smul.addr %s1232, 128
          %s1234 = scalar_lea.vmem [#allocation2], %s1233
          %1235 = dma.done %s1231, 2048
        $region52: #{tpu_custom_call.1} parent=47 // pred_fallthru
          _
      $region48: #{tpu_custom_call.1} parent=5 // pred_fallthru
        _
    $region6: #{tpu_custom_call.1} parent=1 // loop_footer
      %s18 = sadd.s32 1, %s14
    $region7: #{tpu_custom_call.1} parent=1 // loop_footer_branch
      %13 = sbr.rel target = $region3
    $region8: #{tpu_custom_call.1} parent=1 // loop_exit
      _
    %1236 = vsyncpa [#allocation3], 1
    %s1237 = scalar_lea.sflag [#allocation3], 1
    %1238 = vsyncpa %s1237, 1

</llo_original>
